<compile_context>
chip_gen: v6e
topology: v6e:2x2x1
jax: 0.10.0
libtpu: 0.0.40
codegen_flags: <defaults>
</compile_context>

<pallas_src>
import jax
import jax.numpy as jnp
from jax.experimental import pallas as pl
from jax.experimental.pallas import tpu as pltpu


_BLOCK_BYTES = 4 * 1024 * 1024            # ~4 MiB per f32 block
_BLOCK_ELEMS = _BLOCK_BYTES // 4
_VMEM_LIMIT_BYTES = 40 * 1024 * 1024      # in+out double-buffered << 40 MiB; v7x-safe
_SPLIT_BYTES = 2 * 1024 * 1024            # split rows above this so 2 TCs get work


def _round_up(x: int, m: int) -> int:
    return ((x + m - 1) // m) * m


def _stride_kernel(x_ref, y_ref):
    # Hot path: streaming elementwise 2*x over this block (HBM-bound, minimal VPU).
    y_ref[...] = x_ref[...].astype(jnp.float32) * 2.0

    # One-time fixup of the single global element (0, 1).  It always lives in grid
    # block (0, 0).  Touch only one vreg (row 0, first <=128 lanes) and recompute it
    # from x_ref to avoid a store-then-load dependency on y_ref.
    @pl.when((pl.program_id(0) == 0) & (pl.program_id(1) == 0))
    def _():
        w = min(128, y_ref.shape[1])
        row = x_ref[0:1, 0:w].astype(jnp.float32) * 2.0
        cols = jax.lax.broadcasted_iota(jnp.int32, row.shape, 1)
        # Note: if the (possibly flattened) width is 1 the flip is silently skipped
        # (Y[0,1] does not exist; the PyTorch reference would error in that case).
        y_ref[0:1, 0:w] = jnp.where(cols == 1, -row, row)


def _choose_tiles(R: int, C: int) -> tuple[int, int]:
    """Full-row-first (tr, tc) tiles obeying the (8, 128) block-shape rule."""
    if 8 * C <= _BLOCK_ELEMS:
        # Full-row blocks: every DMA is one contiguous slab.
        tc = C
        tr_budget = max(8, (_BLOCK_ELEMS // max(C, 1)) // 8 * 8)
        tr = R if R <= tr_budget else tr_budget
    else:
        # Extremely wide rows: keep 8-row stripes, split columns on 128 lanes.
        tr = R if R <= 8 else 8
        tc_budget = max(128, (_BLOCK_ELEMS // 8) // 128 * 128)
        tc = C if C <= tc_budget else tc_budget

    # v7x has 2 TensorCores: avoid a (1,1) grid on non-trivial arrays by splitting
    # rows so both cores stream half the HBM traffic (harmless on v5e/v6e).
    if tr == R and tc == C and R * C * 4 > _SPLIT_BYTES and R >= 16:
        half = _round_up((R + 1) // 2, 8)
        if half < R:
            tr = half
    return tr, tc


def stride_net(big_tensor: jnp.ndarray) -> jnp.ndarray:
    """Pallas equivalent of StrideNet.forward.

    big_tensor: 2D array [R, C].  Returns float32 [R, C] (torch.zeros default
    dtype) with Y = 2*X and Y[0,1] = -2*X[0,1].
    """
    R, C = big_tensor.shape

    # Lane-dense flatten for awkward widths: reshape the contiguous array to
    # (N/L, L) with L a multiple of 128 so every store is an unmasked, full-lane
    # vst.  Flat element 1 == original (0,1) whenever C >= 2, so the fixup holds.
    flattened = False
    x2 = big_tensor
    if C >= 2 and C % 128 != 0:
        N = R * C
        for L in (2048, 1024, 512, 256, 128):
            if N % L == 0:
                x2 = big_tensor.reshape(N // L, L)
                flattened = True
                break

    Rp, Cp = x2.shape
    tr, tc = _choose_tiles(Rp, Cp)
    grid = (pl.cdiv(Rp, tr), pl.cdiv(Cp, tc))

    y = pl.pallas_call(
        _stride_kernel,
        out_shape=jax.ShapeDtypeStruct((Rp, Cp), jnp.float32),
        grid=grid,
        in_specs=[pl.BlockSpec((tr, tc), lambda i, j: (i, j))],
        out_specs=pl.BlockSpec((tr, tc), lambda i, j: (i, j)),
        compiler_params=pltpu.CompilerParams(
            # Both axes independent -> shard across v7x's two TensorCores.
            dimension_semantics=("parallel", "parallel"),
            # Double-buffered ~4 MiB in + out blocks; override v5e's 16 MiB scoped
            # default while leaving headroom inside v7x's 64 MiB physical VMEM.
            vmem_limit_bytes=_VMEM_LIMIT_BYTES,
        ),
    )(x2)

    return y.reshape(R, C) if flattened else y


def _reference(x: jnp.ndarray) -> jnp.ndarray:
    y = 2.0 * x.astype(jnp.float32)
    return y.at[0, 1].multiply(-1.0)


if __name__ == "__main__":
    key = jax.random.PRNGKey(0)

    # Small "big 2D tensor" demo: 16 rows x 128 cols (lane-aligned last dim).
    x = jax.random.normal(key, (16, 128), dtype=jnp.float32)
    y = jax.block_until_ready(stride_net(x))
    assert y.shape == x.shape and y.dtype == jnp.float32
    assert jnp.allclose(y, _reference(x), atol=1e-6), "mismatch vs reference (aligned)"

    # Awkward width (96 not a multiple of 128) exercises the lane-dense flatten path.
    x2 = jax.random.normal(jax.random.PRNGKey(1), (16, 96), dtype=jnp.float32)
    y2 = jax.block_until_ready(stride_net(x2))
    assert y2.shape == x2.shape and y2.dtype == jnp.float32
    assert jnp.allclose(y2, _reference(x2), atol=1e-6), "mismatch vs reference (flattened)"

    print("KERNEL_OK")
</pallas_src>

<mosaic_0001>
module attributes {stable_mosaic.version = 11 : i64} {
  func.func @_stride_kernel(%arg0: i32, %arg1: i32, %arg2: memref<16x128xf32, #tpu.memory_space<vmem>>, %arg3: memref<16x128xf32, #tpu.memory_space<vmem>>) attributes {dimension_semantics = [#tpu.dimension_semantics<parallel>, #tpu.dimension_semantics<parallel>], iteration_bounds = array<i64: 1, 1>, scalar_prefetch = 0 : i64, scratch_operands = 0 : i64, tpu.core_type = #tpu.core_type<tc>, window_params = [{transform_indices = @transform_0, window_bounds = array<i64: 16, 128>}, {transform_indices = @transform_1, window_bounds = array<i64: 16, 128>}]} {
    %c0 = arith.constant 0 : index
    %c0_0 = arith.constant 0 : index
    %0 = vector.load %arg2[%c0, %c0_0] : memref<16x128xf32, #tpu.memory_space<vmem>>, vector<16x128xf32>
    %cst = arith.constant 2.000000e+00 : f32
    %1 = vector.broadcast %cst : f32 to vector<16x128xf32>
    %2 = arith.mulf %0, %1 : vector<16x128xf32>
    %c0_1 = arith.constant 0 : index
    %c0_2 = arith.constant 0 : index
    %3 = vector.load %arg3[%c0_1, %c0_2] : memref<16x128xf32, #tpu.memory_space<vmem>>, vector<16x128xf32>
    tpu.vector_store %arg3[%c0_1, %c0_2], %2 {strides = array<i32>} : memref<16x128xf32, #tpu.memory_space<vmem>>, vector<16x128xf32>,
    %c0_i32 = arith.constant 0 : i32
    %4 = arith.cmpi eq, %arg0, %c0_i32 : i32
    %c0_i32_3 = arith.constant 0 : i32
    %5 = arith.cmpi eq, %arg1, %c0_i32_3 : i32
    %6 = arith.andi %4, %5 : i1
    %7 = arith.extui %6 : i1 to i32
    %c0_i32_4 = arith.constant 0 : i32
    %8 = arith.cmpi ne, %7, %c0_i32_4 : i32
    scf.if %8 {
      %c0_5 = arith.constant 0 : index
      %c0_6 = arith.constant 0 : index
      %9 = vector.load %arg2[%c0_5, %c0_6] : memref<16x128xf32, #tpu.memory_space<vmem>>, vector<1x128xf32>
      %cst_7 = arith.constant 2.000000e+00 : f32
      %10 = vector.broadcast %cst_7 : f32 to vector<1x128xf32>
      %11 = arith.mulf %9, %10 : vector<1x128xf32>
      %12 = tpu.iota {dimensions = array<i32: 1>} : vector<1x128xi32>
      %c1_i32 = arith.constant 1 : i32
      %13 = vector.broadcast %c1_i32 : i32 to vector<1x128xi32>
      %14 = arith.cmpi eq, %12, %13 : vector<1x128xi32>
      %cst_8 = arith.constant 0.000000e+00 : f32
      %15 = vector.broadcast %cst_8 : f32 to vector<1x128xf32>
      %16 = arith.subf %15, %11 : vector<1x128xf32>
      %17 = arith.select %14, %16, %11 : vector<1x128xi1>, vector<1x128xf32>
      %c0_9 = arith.constant 0 : index
      %c0_10 = arith.constant 0 : index
      %18 = vector.load %arg3[%c0_9, %c0_10] : memref<16x128xf32, #tpu.memory_space<vmem>>, vector<1x128xf32>
      tpu.vector_store %arg3[%c0_9, %c0_10], %17 {strides = array<i32>} : memref<16x128xf32, #tpu.memory_space<vmem>>, vector<1x128xf32>,
    } else {
    }
    return
  }
  func.func @transform_0(%arg0: i32, %arg1: i32) -> (i32, i32) {
    %c0_i32 = arith.constant 0 : i32
    return %arg0, %arg1 : i32, i32
  }
  func.func @transform_1(%arg0: i32, %arg1: i32) -> (i32, i32) {
    %c0_i32 = arith.constant 0 : i32
    return %arg0, %arg1 : i32, i32
  }
}

</mosaic_0001>

<llo_original>
// kernel: tpu_custom_call.1
$region0: #{tpu_custom_call.1}
  #allocation0 [shape = 'u32[]', space=smem, size = 0x4, offset = 0x4, fixed_abs, tag = 'smem constant byte address 0x4 - core index']
  #allocation1 [shape = 'u32[144,128]{1,0:T(1,128)}', space=vmem, size = 0x12000, scoped, tag = 'internal scratch']
  %s0 = inlined_call_operand.hbm [shape: f32[16,128], index: 0, kind: input, shape index: {}]
  %s1 = inlined_call_operand.hbm [shape: f32[16,128], index: 1, kind: output, shape index: {}]
  %s2 = sld [smem:[#allocation0]]
  $region22: #{tpu_custom_call.1} parent=0
    _
  %s4 = ssub.s32 1, %s2
  %s5 = scalar_select 0, %s4, %s2
  $region1: #{tpu_custom_call.1} parent=0
    #allocation2 [shape = 'u8[8192]{0}', space=vmem, size = 0x2000, scoped, tag = 'input window, operand 0, single buffered']
    #allocation3 [shape = 's32[1]{0}', space=sflag, size = 0x4, scoped, tag = 'scoped memory for tpu_custom_call.1']
    #allocation4 [shape = 's32[1]{0}', space=sflag, size = 0x4, scoped, tag = 'scoped memory for tpu_custom_call.1']
    #allocation5 [shape = 'u8[8192]{0}', space=vmem, size = 0x2000, scoped, tag = 'output window, operand 0, single buffered']
    %6 = vsyncpa [#allocation3], 0
    %7 = vsyncpa [#allocation4], 0
    // Predicated region
    $region2: #{tpu_custom_call.1} parent=1 // pred_check
      _
    $region3: #{tpu_custom_call.1} parent=1 // pred_check_branch
      %9 = sbr.rel (0) target = $region5
    $region4: #{tpu_custom_call.1} parent=1 // pred_region
      %s11 = ssub.s32 256, 256
      %12 = vsyncadd [#allocation3], %s11
      %s13 = sshll.u32 [#allocation2], 4
      %s14 = int_to_ptr.vmem [resolvable:$true] %s13
      %19 = dma.hbm_to_vmem [thread:$0]  %s0, 256, %s14, [#allocation3], 128, 128, 8
    $region5: #{tpu_custom_call.1} parent=1 // pred_fallthru
      _
    // Predicated region
    $region6: #{tpu_custom_call.1} parent=1 // pred_check
      _
    $region7: #{tpu_custom_call.1} parent=1 // pred_check_branch
      %21 = sbr.rel (0) target = $region9
    $region8: #{tpu_custom_call.1} parent=1 // pred_region
      %22 = dma.done [#allocation3], 256
    $region9: #{tpu_custom_call.1} parent=1 // pred_fallthru
      _
    %v23 = vld [vmem:[#allocation2] sm:$0xff]
    %v24 = vld [vmem:[#allocation2 + $0x8] sm:$0xff]
    %v25 = vmul.f32 %v23, 2.0
    %v26 = vmul.f32 %v24, 2.0
    %27 = vst [vmem:[#allocation5] sm:$0xff] %v25
    %28 = vst [vmem:[#allocation5 + $0x8] sm:$0xff] %v26
    %p29 = scmp.eq.s32.totalorder 0, 0
    %p30 = scmp.eq.s32.totalorder 0, 0
    %p31 = pnand %p29, %p30
    %p32 = pneg %p31
    // Predicated region
    $region10: #{tpu_custom_call.1} parent=1 // pred_check
      _
    $region11: #{tpu_custom_call.1} parent=1 // pred_check_branch
      %34 = sbr.rel (%p31) target = $region13
    $region12: #{tpu_custom_call.1} parent=1 // pred_region
      %v35 = vld [vmem:[#allocation2] sm:$0x1]
      %v36 = vmul.f32 %v35, 2.0
      %v37 = vlaneseq
      %v38 = vand.u32 %v37, 127
      %vm39 = vcmp.eq.s32.totalorder %v38, 1
      %v40 = vsub.f32 0.0, %v36
      %v41 = vsel %vm39, %v40, %v36
      %42 = vst [vmem:[#allocation5] sm:$0x1] %v41
    $region13: #{tpu_custom_call.1} parent=1 // pred_fallthru
      _
    // Predicated region
    $region14: #{tpu_custom_call.1} parent=1 // pred_check
      _
    $region15: #{tpu_custom_call.1} parent=1 // pred_check_branch
      %44 = sbr.rel (0) target = $region17
    $region16: #{tpu_custom_call.1} parent=1 // pred_region
      %s46 = ssub.s32 256, 256
      %47 = vsyncadd [#allocation4], %s46
      %s48 = sshll.u32 [#allocation5], 4
      %s49 = int_to_ptr.vmem [resolvable:$true] %s48
      %54 = dma.vmem_to_hbm [thread:$0]  %s49, 256, %s1, [#allocation4], 128, 128, 8
    $region17: #{tpu_custom_call.1} parent=1 // pred_fallthru
      _
    // Predicated region
    $region18: #{tpu_custom_call.1} parent=1 // pred_check
      _
    $region19: #{tpu_custom_call.1} parent=1 // pred_check_branch
      %56 = sbr.rel (0) target = $region21
    $region20: #{tpu_custom_call.1} parent=1 // pred_region
      %57 = dma.done [#allocation4], 256
    $region21: #{tpu_custom_call.1} parent=1 // pred_fallthru
      _
    %58 = vsyncpa [#allocation3], 1
    %59 = vsyncpa [#allocation4], 1

</llo_original>
